<compile_context>
chip_gen: v7x
topology: tpu7x:2x2x1
jax: 0.10.0
libtpu: 0.0.40
codegen_flags: <defaults>
</compile_context>

<pallas_src>
import numpy as np
import jax
import jax.numpy as jnp
from jax.experimental import pallas as pl
from jax.experimental.pallas import tpu as pltpu

D = 128


def _pool_matrix(B, L_sign, K, H_out):
    """(B*H_out, B*L_sign) block-diagonal averaging matrix for avg_pool2d(kernel=(K,1))."""
    P = np.zeros((B * H_out, B * L_sign), np.float32)
    for b in range(B):
        for h in range(H_out):
            P[b * H_out + h, b * L_sign + h * K: b * L_sign + h * K + K] = 1.0 / K
    return jnp.asarray(P)


def _make_kernel(B, L_text, H_out):
    BH = B * H_out      # flattened pooled-sign rows
    BK = B * L_text     # flattened text rows
    f32 = jnp.float32

    def kernel(pool_ref, sign_ref, text_ref, w_ref, b_ref, temp_ref, out_ref):
        # --- avg-pool over the sequence axis as a single MXU matmul -------------
        pooled = jnp.dot(pool_ref[...], sign_ref[...],
                         preferred_element_type=f32)                 # (BH, D)
        text = text_ref[...]                                         # (BK, D)

        # --- two-layer MLP projectors, flattened to 2-D matmuls -----------------
        def proj(x, wi1, bi1, wi2, bi2):
            h = jnp.dot(x, w_ref[wi1], preferred_element_type=f32) + b_ref[bi1:bi1 + 1, :]
            h = jnp.maximum(h, 0.0)
            return jnp.dot(h, w_ref[wi2], preferred_element_type=f32) + b_ref[bi2:bi2 + 1, :]

        fs = proj(pooled, 0, 0, 1, 1)                                # (BH, D)
        ft = proj(text,   2, 2, 3, 3)                                # (BK, D)

        # --- L2 normalize along feature dim (eps matches F.normalize) -----------
        def l2norm(x):
            n2 = jnp.sum(x * x, axis=-1, keepdims=True)
            return x * jax.lax.rsqrt(jnp.maximum(n2, 1e-24))         # 1/max(||x||,1e-12)

        fs = l2norm(fs)
        ft = l2norm(ft)

        # --- per-batch block-id masks from iota (no integer division) -----------
        def batch_ids(shape, dim, per):
            idx = jax.lax.broadcasted_iota(jnp.int32, shape, dim)
            bid = jnp.zeros(shape, jnp.int32)
            for b in range(1, B):
                bid = bid + (idx >= b * per).astype(jnp.int32)
            return bid

        mask_qk_b = batch_ids((BH, BK), 0, H_out) == batch_ids((BH, BK), 1, L_text)
        mask_qk = mask_qk_b.astype(f32)                              # (BH, BK)
        mask_qp = (batch_ids((BH, BH), 0, H_out)
                   == batch_ids((BH, BH), 1, H_out)).astype(f32)     # (BH, BH)
        sel = (jax.lax.broadcasted_iota(jnp.int32, (B, BH), 0)
               == batch_ids((B, BH), 1, H_out)).astype(f32) * (1.0 / H_out)  # (B, BH)

        # --- Z = F_sign @ F_text^T on the flattened slabs, masked per batch -----
        dn = (((1,), (1,)), ((), ()))                                # contract last axes
        z = jax.lax.dot_general(fs, ft, dn, preferred_element_type=f32)   # (BH, BK)
        z_max = jnp.max(jnp.where(mask_qk_b, z, f32(-1e30)), axis=-1, keepdims=True)
        e = jnp.exp(z - z_max) * mask_qk                             # zeros off-block
        sm = e / jnp.sum(e, axis=-1, keepdims=True)                  # per-batch softmax
        # Z_hat = softmax(Z) @ Z^T ; block-diagonal (BH,BH) blocks == per-batch result
        zhat = jax.lax.dot_general(sm, z, dn, preferred_element_type=f32)  # (BH, BH)

        # --- M[b] = Z_hat[b].sum(dim=0).mean() = (1/H_out) * block-b sum --------
        row_sums = jnp.sum(zhat * mask_qp, axis=-1, keepdims=True)   # (BH, 1)
        m = jnp.dot(sel, row_sums, preferred_element_type=f32)       # (B, 1)

        # --- contrastive tail (torch.diag of (B,1) -> single element M[0,0]) ----
        t = temp_ref[0, 0]                                           # scalar from SMEM
        e_m = jnp.exp(m / t)                                         # (B, 1)
        e_diag = e_m[0:1, 0:1]                                       # exp(M[0,0]/t)
        sum_rows = e_m                                               # sum over dim 1 of (B,1)
        sum_cols = jnp.sum(e_m, axis=0, keepdims=True)               # (1, 1)
        loss_i = -jnp.log(e_diag / sum_rows)                         # (B, 1)
        loss_t = -jnp.log(e_diag / sum_cols)                         # (1, 1)
        out_ref[...] = (jnp.mean(loss_i, keepdims=True)
                        + jnp.mean(loss_t, keepdims=True)) * 0.5

    return kernel


def contrastive_loss(sign, text, params):
    (w1s, b1s, w2s, b2s, w1t, b1t, w2t, b2t, temp) = params
    B, L_sign, Dd = sign.shape
    _, L_text, _ = text.shape
    K = B                                   # kernel_size = sign_embeddings.size(0)
    H_out = (L_sign - K) // K + 1           # avg_pool2d output length

    # Layout plumbing in the wrapper (free, row-major reshapes / small constants).
    sign2d = sign.reshape(B * L_sign, Dd)
    text2d = text.reshape(B * L_text, Dd)
    w_all = jnp.stack([w1s, w2s, w1t, w2t])                 # (4, D, D)
    b_all = jnp.concatenate([b1s, b2s, b1t, b2t], axis=0)   # (4, D)
    pool = _pool_matrix(B, L_sign, K, H_out)                # (B*H_out, B*L_sign)

    kernel = _make_kernel(B, L_text, H_out)
    vmem = pl.BlockSpec(memory_space=pltpu.MemorySpace.VMEM)
    smem = pl.BlockSpec(memory_space=pltpu.MemorySpace.SMEM)
    out = pl.pallas_call(
        kernel,
        out_shape=jax.ShapeDtypeStruct((1, 1), jnp.float32),
        in_specs=[vmem, vmem, vmem, vmem, vmem, smem],
        out_specs=vmem,
    )(pool, sign2d, text2d, w_all, b_all, temp)
    return out[0, 0]


def contrastive_loss_ref(sign, text, params):
    """Pure-JAX reference mirroring the PyTorch module, for correctness check."""
    (w1s, b1s, w2s, b2s, w1t, b1t, w2t, b2t, temp) = params
    B, L_sign, _ = sign.shape
    K = B
    H_out = (L_sign - K) // K + 1
    with jax.default_matmul_precision("highest"):
        pooled = jnp.mean(sign[:, :H_out * K, :].reshape(B, H_out, K, D), axis=2)

        def proj(x, w1, b1, w2, b2):
            return jnp.maximum(x @ w1 + b1, 0.0) @ w2 + b2

        fs = proj(pooled, w1s, b1s, w2s, b2s)
        ft = proj(text, w1t, b1t, w2t, b2t)
        fs = fs / jnp.maximum(jnp.linalg.norm(fs, axis=-1, keepdims=True), 1e-12)
        ft = ft / jnp.maximum(jnp.linalg.norm(ft, axis=-1, keepdims=True), 1e-12)
        z = jnp.einsum('bqd,bkd->bqk', fs, ft)
        zs = jax.nn.softmax(z, axis=-1)
        zh = jnp.einsum('bqk,bpk->bqp', zs, z)
        m = jnp.mean(jnp.sum(zh, axis=1), axis=1).reshape(B, -1)
        t = temp[0, 0]
        diag = m[0, 0]
        e_m = jnp.exp(m / t)
        loss_i = -jnp.log(jnp.exp(diag / t) / e_m.sum(axis=1))
        loss_t = -jnp.log(jnp.exp(diag / t) / e_m.sum(axis=0))
        return (loss_i.mean() + loss_t.mean()) / 2


if __name__ == "__main__":
    key = jax.random.PRNGKey(0)
    k_sign, k_text, k_par = jax.random.split(key, 3)

    B, L_sign, L_text = 4, 20, 8
    sign = jax.random.uniform(k_sign, (B, L_sign, D), jnp.float32)
    text = jax.random.uniform(k_text, (B, L_text, D), jnp.float32)

    # Deterministic parameter init (PyTorch Linear default: U(-1/sqrt(fan_in), +1/sqrt(fan_in))).
    bound = float(1.0 / jnp.sqrt(jnp.float32(D)))
    pkeys = jax.random.split(k_par, 8)

    def lin(kw, kb):
        w = jax.random.uniform(kw, (D, D), jnp.float32, -bound, bound)
        b = jax.random.uniform(kb, (1, D), jnp.float32, -bound, bound)
        return w, b

    w1s, b1s = lin(pkeys[0], pkeys[1])
    w2s, b2s = lin(pkeys[2], pkeys[3])
    w1t, b1t = lin(pkeys[4], pkeys[5])
    w2t, b2t = lin(pkeys[6], pkeys[7])
    temp = jnp.array([[0.07]], jnp.float32)  # nn.Parameter(torch.tensor([0.07]))
    params = (w1s, b1s, w2s, b2s, w1t, b1t, w2t, b2t, temp)

    loss = contrastive_loss(sign, text, params)
    jax.block_until_ready(loss)

    ref = contrastive_loss_ref(sign, text, params)
    assert jnp.allclose(loss, ref, rtol=1e-3, atol=1e-3), (loss, ref)
    print("KERNEL_OK")
</pallas_src>

<mosaic_0001>
module attributes {stable_mosaic.version = 11 : i64} {
  func.func @kernel(%arg0: memref<20x80xf32, #tpu.memory_space<vmem>>, %arg1: memref<80x128xf32, #tpu.memory_space<vmem>>, %arg2: memref<32x128xf32, #tpu.memory_space<vmem>>, %arg3: memref<4x128x128xf32, #tpu.memory_space<vmem>>, %arg4: memref<4x128xf32, #tpu.memory_space<vmem>>, %arg5: memref<1x1xf32, #tpu.memory_space<smem>>, %arg6: memref<1x1xf32, #tpu.memory_space<vmem>>) attributes {dimension_semantics = [], scalar_prefetch = 0 : i64, scratch_operands = 0 : i64, tpu.core_type = #tpu.core_type<tc>} {
    %c0 = arith.constant 0 : index
    %c0_0 = arith.constant 0 : index
    %0 = vector.load %arg0[%c0, %c0_0] : memref<20x80xf32, #tpu.memory_space<vmem>>, vector<20x80xf32>
    %c0_1 = arith.constant 0 : index
    %c0_2 = arith.constant 0 : index
    %1 = vector.load %arg1[%c0_1, %c0_2] : memref<80x128xf32, #tpu.memory_space<vmem>>, vector<80x128xf32>
    %cst = arith.constant dense<0.000000e+00> : vector<20x128xf32>
    %2 = tpu.matmul %0, %1, %cst {dimension_numbers = #tpu.dot_dimension_numbers<[1], [0], [0], [1], [0, 0, 1, 1], [], []>} : vector<20x80xf32>, vector<80x128xf32>, vector<20x128xf32> -> vector<20x128xf32>
    %c0_3 = arith.constant 0 : index
    %c0_4 = arith.constant 0 : index
    %3 = vector.load %arg2[%c0_3, %c0_4] : memref<32x128xf32, #tpu.memory_space<vmem>>, vector<32x128xf32>
    %c0_5 = arith.constant 0 : index
    %c0_6 = arith.constant 0 : index
    %c0_7 = arith.constant 0 : index
    %4 = vector.load %arg3[%c0_5, %c0_6, %c0_7] : memref<4x128x128xf32, #tpu.memory_space<vmem>>, vector<1x128x128xf32>
    %5 = vector.shape_cast %4 : vector<1x128x128xf32> to vector<128x128xf32>
    %cst_8 = arith.constant dense<0.000000e+00> : vector<20x128xf32>
    %6 = tpu.matmul %2, %5, %cst_8 {dimension_numbers = #tpu.dot_dimension_numbers<[1], [0], [0], [1], [0, 0, 1, 1], [], []>} : vector<20x128xf32>, vector<128x128xf32>, vector<20x128xf32> -> vector<20x128xf32>
    %c0_9 = arith.constant 0 : index
    %c0_10 = arith.constant 0 : index
    %7 = vector.load %arg4[%c0_9, %c0_10] : memref<4x128xf32, #tpu.memory_space<vmem>>, vector<1x128xf32>
    %8 = vector.broadcast %7 : vector<1x128xf32> to vector<20x128xf32>
    %9 = arith.addf %6, %8 : vector<20x128xf32>
    %cst_11 = arith.constant 0.000000e+00 : f32
    %10 = vector.broadcast %cst_11 : f32 to vector<20x128xf32>
    %11 = arith.maximumf %9, %10 : vector<20x128xf32>
    %c1 = arith.constant 1 : index
    %c0_12 = arith.constant 0 : index
    %c0_13 = arith.constant 0 : index
    %12 = vector.load %arg3[%c1, %c0_12, %c0_13] : memref<4x128x128xf32, #tpu.memory_space<vmem>>, vector<1x128x128xf32>
    %13 = vector.shape_cast %12 : vector<1x128x128xf32> to vector<128x128xf32>
    %cst_14 = arith.constant dense<0.000000e+00> : vector<20x128xf32>
    %14 = tpu.matmul %11, %13, %cst_14 {dimension_numbers = #tpu.dot_dimension_numbers<[1], [0], [0], [1], [0, 0, 1, 1], [], []>} : vector<20x128xf32>, vector<128x128xf32>, vector<20x128xf32> -> vector<20x128xf32>
    %c1_15 = arith.constant 1 : index
    %c0_16 = arith.constant 0 : index
    %15 = vector.load %arg4[%c1_15, %c0_16] : memref<4x128xf32, #tpu.memory_space<vmem>>, vector<1x128xf32>
    %16 = vector.broadcast %15 : vector<1x128xf32> to vector<20x128xf32>
    %17 = arith.addf %14, %16 : vector<20x128xf32>
    %c2 = arith.constant 2 : index
    %c0_17 = arith.constant 0 : index
    %c0_18 = arith.constant 0 : index
    %18 = vector.load %arg3[%c2, %c0_17, %c0_18] : memref<4x128x128xf32, #tpu.memory_space<vmem>>, vector<1x128x128xf32>
    %19 = vector.shape_cast %18 : vector<1x128x128xf32> to vector<128x128xf32>
    %cst_19 = arith.constant dense<0.000000e+00> : vector<32x128xf32>
    %20 = tpu.matmul %3, %19, %cst_19 {dimension_numbers = #tpu.dot_dimension_numbers<[1], [0], [0], [1], [0, 0, 1, 1], [], []>} : vector<32x128xf32>, vector<128x128xf32>, vector<32x128xf32> -> vector<32x128xf32>
    %c2_20 = arith.constant 2 : index
    %c0_21 = arith.constant 0 : index
    %21 = vector.load %arg4[%c2_20, %c0_21] : memref<4x128xf32, #tpu.memory_space<vmem>>, vector<1x128xf32>
    %22 = vector.broadcast %21 : vector<1x128xf32> to vector<32x128xf32>
    %23 = arith.addf %20, %22 : vector<32x128xf32>
    %cst_22 = arith.constant 0.000000e+00 : f32
    %24 = vector.broadcast %cst_22 : f32 to vector<32x128xf32>
    %25 = arith.maximumf %23, %24 : vector<32x128xf32>
    %c3 = arith.constant 3 : index
    %c0_23 = arith.constant 0 : index
    %c0_24 = arith.constant 0 : index
    %26 = vector.load %arg3[%c3, %c0_23, %c0_24] : memref<4x128x128xf32, #tpu.memory_space<vmem>>, vector<1x128x128xf32>
    %27 = vector.shape_cast %26 : vector<1x128x128xf32> to vector<128x128xf32>
    %cst_25 = arith.constant dense<0.000000e+00> : vector<32x128xf32>
    %28 = tpu.matmul %25, %27, %cst_25 {dimension_numbers = #tpu.dot_dimension_numbers<[1], [0], [0], [1], [0, 0, 1, 1], [], []>} : vector<32x128xf32>, vector<128x128xf32>, vector<32x128xf32> -> vector<32x128xf32>
    %c3_26 = arith.constant 3 : index
    %c0_27 = arith.constant 0 : index
    %29 = vector.load %arg4[%c3_26, %c0_27] : memref<4x128xf32, #tpu.memory_space<vmem>>, vector<1x128xf32>
    %30 = vector.broadcast %29 : vector<1x128xf32> to vector<32x128xf32>
    %31 = arith.addf %28, %30 : vector<32x128xf32>
    %32 = arith.mulf %17, %17 : vector<20x128xf32>
    %cst_28 = arith.constant dense<0.000000e+00> : vector<20xf32>
    %33 = vector.multi_reduction <add>, %32, %cst_28 [1] : vector<20x128xf32> to vector<20xf32>
    %34 = vector.shape_cast %33 : vector<20xf32> to vector<20x1xf32>
    %cst_29 = arith.constant 1.000000e-24 : f32
    %35 = vector.broadcast %cst_29 : f32 to vector<20x1xf32>
    %36 = arith.maximumf %34, %35 : vector<20x1xf32>
    %37 = math.rsqrt %36 : vector<20x1xf32>
    %38 = vector.broadcast %37 : vector<20x1xf32> to vector<20x128xf32>
    %39 = arith.mulf %17, %38 : vector<20x128xf32>
    %40 = arith.mulf %31, %31 : vector<32x128xf32>
    %cst_30 = arith.constant dense<0.000000e+00> : vector<32xf32>
    %41 = vector.multi_reduction <add>, %40, %cst_30 [1] : vector<32x128xf32> to vector<32xf32>
    %42 = vector.shape_cast %41 : vector<32xf32> to vector<32x1xf32>
    %cst_31 = arith.constant 1.000000e-24 : f32
    %43 = vector.broadcast %cst_31 : f32 to vector<32x1xf32>
    %44 = arith.maximumf %42, %43 : vector<32x1xf32>
    %45 = math.rsqrt %44 : vector<32x1xf32>
    %46 = vector.broadcast %45 : vector<32x1xf32> to vector<32x128xf32>
    %47 = arith.mulf %31, %46 : vector<32x128xf32>
    %48 = tpu.iota {dimensions = array<i32: 0>} : vector<20x32xi32>
    %c0_i32 = arith.constant 0 : i32
    %49 = vector.broadcast %c0_i32 : i32 to vector<20x32xi32>
    %c5_i32 = arith.constant 5 : i32
    %50 = vector.broadcast %c5_i32 : i32 to vector<20x32xi32>
    %51 = arith.cmpi sge, %48, %50 : vector<20x32xi32>
    %52 = arith.extui %51 : vector<20x32xi1> to vector<20x32xi32>
    %53 = arith.addi %49, %52 : vector<20x32xi32>
    %c10_i32 = arith.constant 10 : i32
    %54 = vector.broadcast %c10_i32 : i32 to vector<20x32xi32>
    %55 = arith.cmpi sge, %48, %54 : vector<20x32xi32>
    %56 = arith.extui %55 : vector<20x32xi1> to vector<20x32xi32>
    %57 = arith.addi %53, %56 : vector<20x32xi32>
    %c15_i32 = arith.constant 15 : i32
    %58 = vector.broadcast %c15_i32 : i32 to vector<20x32xi32>
    %59 = arith.cmpi sge, %48, %58 : vector<20x32xi32>
    %60 = arith.extui %59 : vector<20x32xi1> to vector<20x32xi32>
    %61 = arith.addi %57, %60 : vector<20x32xi32>
    %62 = tpu.iota {dimensions = array<i32: 1>} : vector<20x32xi32>
    %c0_i32_32 = arith.constant 0 : i32
    %63 = vector.broadcast %c0_i32_32 : i32 to vector<20x32xi32>
    %c8_i32 = arith.constant 8 : i32
    %64 = vector.broadcast %c8_i32 : i32 to vector<20x32xi32>
    %65 = arith.cmpi sge, %62, %64 : vector<20x32xi32>
    %66 = arith.extui %65 : vector<20x32xi1> to vector<20x32xi32>
    %67 = arith.addi %63, %66 : vector<20x32xi32>
    %c16_i32 = arith.constant 16 : i32
    %68 = vector.broadcast %c16_i32 : i32 to vector<20x32xi32>
    %69 = arith.cmpi sge, %62, %68 : vector<20x32xi32>
    %70 = arith.extui %69 : vector<20x32xi1> to vector<20x32xi32>
    %71 = arith.addi %67, %70 : vector<20x32xi32>
    %c24_i32 = arith.constant 24 : i32
    %72 = vector.broadcast %c24_i32 : i32 to vector<20x32xi32>
    %73 = arith.cmpi sge, %62, %72 : vector<20x32xi32>
    %74 = arith.extui %73 : vector<20x32xi1> to vector<20x32xi32>
    %75 = arith.addi %71, %74 : vector<20x32xi32>
    %76 = arith.cmpi eq, %61, %75 : vector<20x32xi32>
    %77 = arith.extui %76 : vector<20x32xi1> to vector<20x32xi32>
    %78 = arith.sitofp %77 : vector<20x32xi32> to vector<20x32xf32>
    %79 = tpu.iota {dimensions = array<i32: 0>} : vector<20x20xi32>
    %c0_i32_33 = arith.constant 0 : i32
    %80 = vector.broadcast %c0_i32_33 : i32 to vector<20x20xi32>
    %c5_i32_34 = arith.constant 5 : i32
    %81 = vector.broadcast %c5_i32_34 : i32 to vector<20x20xi32>
    %82 = arith.cmpi sge, %79, %81 : vector<20x20xi32>
    %83 = arith.extui %82 : vector<20x20xi1> to vector<20x20xi32>
    %84 = arith.addi %80, %83 : vector<20x20xi32>
    %c10_i32_35 = arith.constant 10 : i32
    %85 = vector.broadcast %c10_i32_35 : i32 to vector<20x20xi32>
    %86 = arith.cmpi sge, %79, %85 : vector<20x20xi32>
    %87 = arith.extui %86 : vector<20x20xi1> to vector<20x20xi32>
    %88 = arith.addi %84, %87 : vector<20x20xi32>
    %c15_i32_36 = arith.constant 15 : i32
    %89 = vector.broadcast %c15_i32_36 : i32 to vector<20x20xi32>
    %90 = arith.cmpi sge, %79, %89 : vector<20x20xi32>
    %91 = arith.extui %90 : vector<20x20xi1> to vector<20x20xi32>
    %92 = arith.addi %88, %91 : vector<20x20xi32>
    %93 = tpu.iota {dimensions = array<i32: 1>} : vector<20x20xi32>
    %c0_i32_37 = arith.constant 0 : i32
    %94 = vector.broadcast %c0_i32_37 : i32 to vector<20x20xi32>
    %c5_i32_38 = arith.constant 5 : i32
    %95 = vector.broadcast %c5_i32_38 : i32 to vector<20x20xi32>
    %96 = arith.cmpi sge, %93, %95 : vector<20x20xi32>
    %97 = arith.extui %96 : vector<20x20xi1> to vector<20x20xi32>
    %98 = arith.addi %94, %97 : vector<20x20xi32>
    %c10_i32_39 = arith.constant 10 : i32
    %99 = vector.broadcast %c10_i32_39 : i32 to vector<20x20xi32>
    %100 = arith.cmpi sge, %93, %99 : vector<20x20xi32>
    %101 = arith.extui %100 : vector<20x20xi1> to vector<20x20xi32>
    %102 = arith.addi %98, %101 : vector<20x20xi32>
    %c15_i32_40 = arith.constant 15 : i32
    %103 = vector.broadcast %c15_i32_40 : i32 to vector<20x20xi32>
    %104 = arith.cmpi sge, %93, %103 : vector<20x20xi32>
    %105 = arith.extui %104 : vector<20x20xi1> to vector<20x20xi32>
    %106 = arith.addi %102, %105 : vector<20x20xi32>
    %107 = arith.cmpi eq, %92, %106 : vector<20x20xi32>
    %108 = arith.extui %107 : vector<20x20xi1> to vector<20x20xi32>
    %109 = arith.sitofp %108 : vector<20x20xi32> to vector<20x20xf32>
    %110 = tpu.iota {dimensions = array<i32: 0>} : vector<4x20xi32>
    %111 = tpu.iota {dimensions = array<i32: 1>} : vector<4x20xi32>
    %c0_i32_41 = arith.constant 0 : i32
    %112 = vector.broadcast %c0_i32_41 : i32 to vector<4x20xi32>
    %c5_i32_42 = arith.constant 5 : i32
    %113 = vector.broadcast %c5_i32_42 : i32 to vector<4x20xi32>
    %114 = arith.cmpi sge, %111, %113 : vector<4x20xi32>
    %115 = arith.extui %114 : vector<4x20xi1> to vector<4x20xi32>
    %116 = arith.addi %112, %115 : vector<4x20xi32>
    %c10_i32_43 = arith.constant 10 : i32
    %117 = vector.broadcast %c10_i32_43 : i32 to vector<4x20xi32>
    %118 = arith.cmpi sge, %111, %117 : vector<4x20xi32>
    %119 = arith.extui %118 : vector<4x20xi1> to vector<4x20xi32>
    %120 = arith.addi %116, %119 : vector<4x20xi32>
    %c15_i32_44 = arith.constant 15 : i32
    %121 = vector.broadcast %c15_i32_44 : i32 to vector<4x20xi32>
    %122 = arith.cmpi sge, %111, %121 : vector<4x20xi32>
    %123 = arith.extui %122 : vector<4x20xi1> to vector<4x20xi32>
    %124 = arith.addi %120, %123 : vector<4x20xi32>
    %125 = arith.cmpi eq, %110, %124 : vector<4x20xi32>
    %126 = arith.extui %125 : vector<4x20xi1> to vector<4x20xi32>
    %127 = arith.sitofp %126 : vector<4x20xi32> to vector<4x20xf32>
    %cst_45 = arith.constant 2.000000e-01 : f32
    %128 = vector.broadcast %cst_45 : f32 to vector<4x20xf32>
    %129 = arith.mulf %127, %128 : vector<4x20xf32>
    %cst_46 = arith.constant dense<0.000000e+00> : vector<20x32xf32>
    %130 = tpu.matmul %39, %47, %cst_46 {dimension_numbers = #tpu.dot_dimension_numbers<[1], [1], [0], [0], [0, 0, 1, 0], [], []>} : vector<20x128xf32>, vector<32x128xf32>, vector<20x32xf32> -> vector<20x32xf32>
    %cst_47 = arith.constant -1.000000e+30 : f32
    %131 = vector.broadcast %cst_47 : f32 to vector<20x32xf32>
    %132 = arith.select %76, %130, %131 : vector<20x32xi1>, vector<20x32xf32>
    %cst_48 = arith.constant dense<0xFF800000> : vector<20xf32>
    %133 = vector.multi_reduction <maximumf>, %132, %cst_48 [1] : vector<20x32xf32> to vector<20xf32>
    %134 = vector.shape_cast %133 : vector<20xf32> to vector<20x1xf32>
    %135 = vector.broadcast %134 : vector<20x1xf32> to vector<20x32xf32>
    %136 = arith.subf %130, %135 : vector<20x32xf32>
    %137 = math.exp %136 : vector<20x32xf32>
    %138 = arith.mulf %137, %78 : vector<20x32xf32>
    %cst_49 = arith.constant dense<0.000000e+00> : vector<20xf32>
    %139 = vector.multi_reduction <add>, %138, %cst_49 [1] : vector<20x32xf32> to vector<20xf32>
    %140 = vector.shape_cast %139 : vector<20xf32> to vector<20x1xf32>
    %141 = vector.broadcast %140 : vector<20x1xf32> to vector<20x32xf32>
    %142 = arith.divf %138, %141 : vector<20x32xf32>
    %cst_50 = arith.constant dense<0.000000e+00> : vector<20x20xf32>
    %143 = tpu.matmul %142, %130, %cst_50 {dimension_numbers = #tpu.dot_dimension_numbers<[1], [1], [0], [0], [0, 0, 1, 0], [], []>} : vector<20x32xf32>, vector<20x32xf32>, vector<20x20xf32> -> vector<20x20xf32>
    %144 = arith.mulf %143, %109 : vector<20x20xf32>
    %cst_51 = arith.constant dense<0.000000e+00> : vector<20xf32>
    %145 = vector.multi_reduction <add>, %144, %cst_51 [1] : vector<20x20xf32> to vector<20xf32>
    %146 = vector.shape_cast %145 : vector<20xf32> to vector<20x1xf32>
    %cst_52 = arith.constant dense<0.000000e+00> : vector<4x1xf32>
    %147 = tpu.matmul %129, %146, %cst_52 {dimension_numbers = #tpu.dot_dimension_numbers<[1], [0], [0], [1], [0, 0, 1, 1], [], []>} : vector<4x20xf32>, vector<20x1xf32>, vector<4x1xf32> -> vector<4x1xf32>
    %c0_53 = arith.constant 0 : index
    %c0_54 = arith.constant 0 : index
    %148 = memref.load %arg5[%c0_53, %c0_54] : memref<1x1xf32, #tpu.memory_space<smem>>
    %149 = vector.broadcast %148 : f32 to vector<4x1xf32>
    %150 = arith.divf %147, %149 : vector<4x1xf32>
    %151 = math.exp %150 : vector<4x1xf32>
    %152 = vector.extract_strided_slice %151 {offsets = [0, 0], sizes = [1, 1], strides = [1, 1]} : vector<4x1xf32> to vector<1x1xf32>
    %cst_55 = arith.constant dense<0.000000e+00> : vector<1xf32>
    %153 = vector.multi_reduction <add>, %151, %cst_55 [0] : vector<4x1xf32> to vector<1xf32>
    %154 = vector.shape_cast %153 : vector<1xf32> to vector<1x1xf32>
    %155 = vector.broadcast %152 : vector<1x1xf32> to vector<4x1xf32>
    %156 = arith.divf %155, %151 : vector<4x1xf32>
    %157 = math.log %156 : vector<4x1xf32>
    %cst_56 = arith.constant 0.000000e+00 : f32
    %158 = vector.broadcast %cst_56 : f32 to vector<4x1xf32>
    %159 = arith.subf %158, %157 : vector<4x1xf32>
    %160 = arith.divf %152, %154 : vector<1x1xf32>
    %161 = math.log %160 : vector<1x1xf32>
    %cst_57 = arith.constant 0.000000e+00 : f32
    %162 = vector.broadcast %cst_57 : f32 to vector<1x1xf32>
    %163 = arith.subf %162, %161 : vector<1x1xf32>
    %164 = vector.shape_cast %159 : vector<4x1xf32> to vector<1x4x1xf32>
    %cst_58 = arith.constant dense<0.000000e+00> : vector<1xf32>
    %165 = vector.multi_reduction <add>, %164, %cst_58 [1, 2] : vector<1x4x1xf32> to vector<1xf32>
    %166 = vector.shape_cast %165 : vector<1xf32> to vector<1x1x1xf32>
    %167 = vector.extract %166[0, 0, 0] : f32 from vector<1x1x1xf32>
    %168 = vector.broadcast %167 : f32 to vector<1x1xf32>
    %cst_59 = arith.constant 4.000000e+00 : f32
    %169 = vector.broadcast %cst_59 : f32 to vector<1x1xf32>
    %170 = arith.divf %168, %169 : vector<1x1xf32>
    %171 = vector.shape_cast %163 : vector<1x1xf32> to vector<1x1x1xf32>
    %cst_60 = arith.constant dense<0.000000e+00> : vector<1xf32>
    %172 = vector.multi_reduction <add>, %171, %cst_60 [1, 2] : vector<1x1x1xf32> to vector<1xf32>
    %173 = vector.shape_cast %172 : vector<1xf32> to vector<1x1x1xf32>
    %174 = vector.extract %173[0, 0, 0] : f32 from vector<1x1x1xf32>
    %175 = vector.broadcast %174 : f32 to vector<1x1xf32>
    %cst_61 = arith.constant 1.000000e+00 : f32
    %176 = vector.broadcast %cst_61 : f32 to vector<1x1xf32>
    %177 = arith.divf %175, %176 : vector<1x1xf32>
    %178 = arith.addf %170, %177 : vector<1x1xf32>
    %cst_62 = arith.constant 5.000000e-01 : f32
    %179 = vector.broadcast %cst_62 : f32 to vector<1x1xf32>
    %180 = arith.mulf %178, %179 : vector<1x1xf32>
    %c0_63 = arith.constant 0 : index
    %c0_64 = arith.constant 0 : index
    %181 = vector.load %arg6[%c0_63, %c0_64] : memref<1x1xf32, #tpu.memory_space<vmem>>, vector<1x1xf32>
    tpu.vector_store %arg6[%c0_63, %c0_64], %180 {strides = array<i32>} : memref<1x1xf32, #tpu.memory_space<vmem>>, vector<1x1xf32>,
    return
  }
}

</mosaic_0001>

<llo_original>
// kernel: tpu_custom_call.1
$region0: #{tpu_custom_call.1}
  #allocation0 [shape = 'u32[]', space=smem, size = 0x4, offset = 0x4, fixed_abs, tag = 'smem constant byte address 0x4 - core index']
  #allocation1 [shape = 'u32[144,128]{1,0:T(1,128)}', space=vmem, size = 0x12000, scoped, tag = 'internal scratch']
  #allocation2 [shape = 'f32[1,1]{1,0:T(1,128)S(6)}', space=smem, size = 0x200, scoped, tag = 'scoped memory for tpu_custom_call.1']
  %s0 = inlined_call_operand.hbm [shape: f32[20,80], index: 0, kind: input, shape index: {}]
  %s1 = inlined_call_operand.hbm [shape: f32[80,128], index: 1, kind: input, shape index: {}]
  %s2 = inlined_call_operand.hbm [shape: f32[32,128], index: 2, kind: input, shape index: {}]
  %s3 = inlined_call_operand.hbm [shape: f32[4,128,128], index: 3, kind: input, shape index: {}]
  %s4 = inlined_call_operand.vmem [shape: f32[4,128], index: 4, kind: input, shape index: {}]
  %s5 = inlined_call_operand.<no memory space> [shape: f32[1,1], index: 5, kind: input, shape index: {}]
  %s6 = inlined_call_operand.hbm [shape: f32[1,1], index: 6, kind: output, shape index: {}]
  %s7 = sld [smem:[#allocation0]]
  $region50: #{tpu_custom_call.1} parent=0
    _
  %s9 = ssub.s32 1, %s7
  %s10 = scalar_select 0, %s9, %s7
  %11 = sst [smem:[#allocation2]] %s5
  $region1: #{tpu_custom_call.1} parent=0
    #allocation3 [shape = 'u8[12288]{0}', space=vmem, size = 0x3000, scoped, tag = 'input window, operand 0, single buffered']
    #allocation4 [shape = 's32[1]{0}', space=sflag, size = 0x4, scoped, tag = 'scoped memory for tpu_custom_call.1']
    #allocation5 [shape = 's32[1]{0}', space=sflag, size = 0x4, scoped, tag = 'scoped memory for tpu_custom_call.1']
    #allocation6 [shape = 'u8[40960]{0}', space=vmem, size = 0xa000, scoped, tag = 'input window, operand 1, single buffered']
    #allocation7 [shape = 's32[1]{0}', space=sflag, size = 0x4, scoped, tag = 'scoped memory for tpu_custom_call.1']
    #allocation8 [shape = 'u8[16384]{0}', space=vmem, size = 0x4000, scoped, tag = 'input window, operand 2, single buffered']
    #allocation9 [shape = 'u8[262144]{0}', space=vmem, size = 0x40000, scoped, tag = 'input window, operand 3, single buffered']
    #allocation10 [shape = 's32[1]{0}', space=sflag, size = 0x4, scoped, tag = 'scoped memory for tpu_custom_call.1']
    #allocation11 [shape = 'u8[512]{0}', space=vmem, size = 0x400, scoped, tag = 'output window, operand 0, single buffered']
    %12 = vsyncpa [#allocation4], 0
    %13 = vsyncpa [#allocation7], 0
    %14 = vsyncpa [#allocation10], 0
    %15 = vsyncpa [#allocation5], 0
    // Predicated region
    $region2: #{tpu_custom_call.1} parent=1 // pred_check
      _
    $region3: #{tpu_custom_call.1} parent=1 // pred_check_branch
      %17 = sbr.rel (0) target = $region5
    $region4: #{tpu_custom_call.1} parent=1 // pred_region
      %s19 = ssub.s32 384, 384
      %20 = vsyncadd [#allocation4], %s19
      %s21 = sshll.u32 [#allocation3], 4
      %s22 = int_to_ptr.vmem [resolvable:$true] %s21
      %27 = dma.hbm_to_vmem [thread:$0]  %s0, 384, %s22, [#allocation4], 128, 128, 8
    $region5: #{tpu_custom_call.1} parent=1 // pred_fallthru
      _
    // Predicated region
    $region6: #{tpu_custom_call.1} parent=1 // pred_check
      _
    $region7: #{tpu_custom_call.1} parent=1 // pred_check_branch
      %29 = sbr.rel (0) target = $region9
    $region8: #{tpu_custom_call.1} parent=1 // pred_region
      %s31 = ssub.s32 1280, 1280
      %32 = vsyncadd [#allocation7], %s31
      %s33 = sshll.u32 [#allocation6], 4
      %s34 = int_to_ptr.vmem [resolvable:$true] %s33
      %39 = dma.hbm_to_vmem [thread:$0]  %s1, 1280, %s34, [#allocation7], 128, 128, 8
    $region9: #{tpu_custom_call.1} parent=1 // pred_fallthru
      _
    // Predicated region
    $region10: #{tpu_custom_call.1} parent=1 // pred_check
      _
    $region11: #{tpu_custom_call.1} parent=1 // pred_check_branch
      %41 = sbr.rel (0) target = $region13
    $region12: #{tpu_custom_call.1} parent=1 // pred_region
      %s43 = ssub.s32 512, 512
      %44 = vsyncadd [#allocation7], %s43
      %s45 = sshll.u32 [#allocation8], 4
      %s46 = int_to_ptr.vmem [resolvable:$true] %s45
      %51 = dma.hbm_to_vmem [thread:$0]  %s2, 512, %s46, [#allocation7], 128, 128, 8
    $region13: #{tpu_custom_call.1} parent=1 // pred_fallthru
      _
    // Predicated region
    $region14: #{tpu_custom_call.1} parent=1 // pred_check
      _
    $region15: #{tpu_custom_call.1} parent=1 // pred_check_branch
      %53 = sbr.rel (0) target = $region17
    $region16: #{tpu_custom_call.1} parent=1 // pred_region
      %s55 = ssub.s32 8192, 8192
      %56 = vsyncadd [#allocation10], %s55
      %s57 = sshll.u32 [#allocation9], 4
      %s58 = int_to_ptr.vmem [resolvable:$true] %s57
      %63 = dma.hbm_to_vmem [thread:$0]  %s3, 8192, %s58, [#allocation10], 128, 128, 8
    $region17: #{tpu_custom_call.1} parent=1 // pred_fallthru
      _
    // Predicated region
    $region18: #{tpu_custom_call.1} parent=1 // pred_check
      _
    $region19: #{tpu_custom_call.1} parent=1 // pred_check_branch
      %65 = sbr.rel (0) target = $region21
    $region20: #{tpu_custom_call.1} parent=1 // pred_region
      _
    $region21: #{tpu_custom_call.1} parent=1 // pred_fallthru
      _
    // Predicated region
    $region22: #{tpu_custom_call.1} parent=1 // pred_check
      _
    $region23: #{tpu_custom_call.1} parent=1 // pred_check_branch
      %67 = sbr.rel (0) target = $region25
    $region24: #{tpu_custom_call.1} parent=1 // pred_region
      _
    $region25: #{tpu_custom_call.1} parent=1 // pred_fallthru
      _
    // Predicated region
    $region26: #{tpu_custom_call.1} parent=1 // pred_check
      _
    $region27: #{tpu_custom_call.1} parent=1 // pred_check_branch
      %69 = sbr.rel (0) target = $region29
    $region28: #{tpu_custom_call.1} parent=1 // pred_region
      %70 = dma.done [#allocation4], 384
    $region29: #{tpu_custom_call.1} parent=1 // pred_fallthru
      _
    // Predicated region
    $region30: #{tpu_custom_call.1} parent=1 // pred_check
      _
    $region31: #{tpu_custom_call.1} parent=1 // pred_check_branch
      %72 = sbr.rel (0) target = $region33
    $region32: #{tpu_custom_call.1} parent=1 // pred_region
      %73 = dma.done [#allocation7], 1280
    $region33: #{tpu_custom_call.1} parent=1 // pred_fallthru
      _
    // Predicated region
    $region34: #{tpu_custom_call.1} parent=1 // pred_check
      _
    $region35: #{tpu_custom_call.1} parent=1 // pred_check_branch
      %75 = sbr.rel (0) target = $region37
    $region36: #{tpu_custom_call.1} parent=1 // pred_region
      %76 = dma.done [#allocation7], 512
    $region37: #{tpu_custom_call.1} parent=1 // pred_fallthru
      _
    // Predicated region
    $region38: #{tpu_custom_call.1} parent=1 // pred_check
      _
    $region39: #{tpu_custom_call.1} parent=1 // pred_check_branch
      %78 = sbr.rel (0) target = $region41
    $region40: #{tpu_custom_call.1} parent=1 // pred_region
      %79 = dma.done [#allocation10], 8192
    $region41: #{tpu_custom_call.1} parent=1 // pred_fallthru
      _
    %v80 = vld [vmem:[#allocation3] sm:$0xff]
    %v81 = vld [vmem:[#allocation3 + $0x8] sm:$0xff]
    %v82 = vld [vmem:[#allocation3 + $0x10] sm:$0xf]
    %v83 = vld [vmem:[#allocation6] sm:$0xff]
    %v84 = vld [vmem:[#allocation6 + $0x8] sm:$0xff]
    %v85 = vld [vmem:[#allocation6 + $0x10] sm:$0xff]
    %v86 = vld [vmem:[#allocation6 + $0x18] sm:$0xff]
    %v87 = vld [vmem:[#allocation6 + $0x20] sm:$0xff]
    %v88 = vld [vmem:[#allocation6 + $0x28] sm:$0xff]
    %v89 = vld [vmem:[#allocation6 + $0x30] sm:$0xff]
    %v90 = vld [vmem:[#allocation6 + $0x38] sm:$0xff]
    %v91 = vld [vmem:[#allocation6 + $0x40] sm:$0xff]
    %v92 = vld [vmem:[#allocation6 + $0x48] sm:$0xff]
    %vm93 = vcmask 654336
    %v95 = vsel %vm93, %v80, 0
    %v98 = vsel %vm93, %v81, 0
    %v101 = vsel %vm93, %v82, 0
    %103 = vmatprep.subr.mxu0 0.0
    %104 = vmatpush1.msra.mxu0 %v83
    %105 = vmatprep.subr.mxu0 0.0
    %106 = vmatpush1.msra.mxu0 %v84
    %107 = vmatprep.subr.mxu0 0.0
    %108 = vmatpush1.msra.mxu0 %v85
    %109 = vmatprep.subr.mxu0 0.0
    %110 = vmatpush1.msra.mxu0 %v86
    %111 = vmatprep.subr.mxu0 0.0
    %112 = vmatpush1.msra.mxu0 %v87
    %113 = vmatprep.subr.mxu0 0.0
    %114 = vmatpush1.msra.mxu0 %v88
    %115 = vmatprep.subr.mxu0 0.0
    %116 = vmatpush1.msra.mxu0 %v89
    %117 = vmatprep.subr.mxu0 0.0
    %118 = vmatpush1.msra.mxu0 %v90
    %119 = vmatprep.subr.mxu0 0.0
    %120 = vmatpush1.msra.mxu0 %v91
    %121 = vmatprep.subr.mxu0 0.0
    %122 = vmatpush1.msra.mxu0 %v92
    %123 = vmatprep.subr.mxu0 0.0
    %124 = vmatpush1.msra.mxu0 0.0
    %125 = vmatprep.subr.mxu0 0.0
    %126 = vmatpush1.msra.mxu0 0.0
    %127 = vmatprep.subr.mxu0 0.0
    %128 = vmatpush1.msra.mxu0 0.0
    %129 = vmatprep.subr.mxu0 0.0
    %130 = vmatpush1.msra.mxu0 0.0
    %131 = vmatprep.subr.mxu0 0.0
    %132 = vmatpush1.msra.mxu0 0.0
    %133 = vmatprep.subr.mxu0 0.0
    %134 = vmatpush1.msra.mxu0 0.0
    %135 = vmatprep.subr.mxu0 0.0
    %136 = vmatpush1.msra.mxu0 0.0
    %137 = vmatprep.subr.mxu0 0.0
    %138 = vmatpush1.msra.mxu0 0.0
    %139 = vmatprep.subr.mxu0 0.0
    %140 = vmatpush1.msra.mxu0 0.0
    %141 = vmatprep.subr.mxu0 0.0
    %142 = vmatpush1.msra.mxu0 0.0
    %143 = vmatprep.subr.mxu0 0.0
    %144 = vmatpush1.msra.mxu0 0.0
    %145 = vmatprep.subr.mxu0 0.0
    %146 = vmatpush1.msra.mxu0 0.0
    %147 = vmatprep.subr.mxu0 0.0
    %148 = vmatpush1.msra.mxu0 0.0
    %149 = vmatprep.subr.mxu0 0.0
    %150 = vmatpush1.msra.mxu0 0.0
    %151 = vmatprep.subr.mxu0 0.0
    %152 = vmatpush1.msra.mxu0 0.0
    %153 = vmatprep.subr.mxu0 0.0
    %154 = vmatpush1.msra.mxu0 0.0
    %155 = vmatprep.subr.mxu0 0.0
    %156 = vmatpush1.msra.mxu0 0.0
    %157 = vmatprep.subr.mxu0 0.0
    %158 = vmatpush1.msra.mxu0 0.0
    %159 = vmatprep.subr.mxu0 0.0
    %160 = vmatpush1.msra.mxu0 0.0
    %161 = vmatprep.subr.mxu0 0.0
    %162 = vmatpush1.msra.mxu0 0.0
    %163 = vmatprep.subr.mxu0 0.0
    %164 = vmatpush1.msra.mxu0 0.0
    %165 = vmatprep.subr.mxu0 0.0
    %166 = vmatpush1.msra.mxu0 0.0
    %167 = vmatprep.mubr.f32.mxu0 0.0
    %168 = vmatmul.mubr.f32.gmra.mrb[0].mxu0 %v95
    %v169 = vpop.f32.mrb[0].mxu0
    %v170 = vadd.f32 0.0, %v169
    %v171 = vpop.f32.mrb[0].mxu0
    %172 = vmatprep.mubr.f32.mxu0 0.0
    %173 = vmatmul.mubr.f32.gmra.mrb[0].mxu0 %v98
    %v174 = vpop.f32.mrb[0].mxu0
    %v175 = vadd.f32 0.0, %v174
    %v176 = vpop.f32.mrb[0].mxu0
    %177 = vmatprep.mubr.f32.mxu0 0.0
    %178 = vmatmul.mubr.f32.gmra.mrb[0].mxu0 %v101
    %v179 = vpop.f32.mrb[0].mxu0
    %v180 = vadd.f32 0.0, %v179
    %v181 = vpop.f32.mrb[0].mxu0
    %182 = vdwg.mxu0
    %v183 = vld [vmem:[#allocation8] sm:$0xff]
    %v184 = vld [vmem:[#allocation8 + $0x8] sm:$0xff]
    %v185 = vld [vmem:[#allocation8 + $0x10] sm:$0xff]
    %v186 = vld [vmem:[#allocation8 + $0x18] sm:$0xff]
    %v187 = vld [vmem:[#allocation9] sm:$0xff]
    %v188 = vld [vmem:[#allocation9 + $0x8] sm:$0xff]
    %v189 = vld [vmem:[#allocation9 + $0x10] sm:$0xff]
    %v190 = vld [vmem:[#allocation9 + $0x18] sm:$0xff]
    %v191 = vld [vmem:[#allocation9 + $0x20] sm:$0xff]
    %v192 = vld [vmem:[#allocation9 + $0x28] sm:$0xff]
    %v193 = vld [vmem:[#allocation9 + $0x30] sm:$0xff]
    %v194 = vld [vmem:[#allocation9 + $0x38] sm:$0xff]
    %v195 = vld [vmem:[#allocation9 + $0x40] sm:$0xff]
    %v196 = vld [vmem:[#allocation9 + $0x48] sm:$0xff]
    %v197 = vld [vmem:[#allocation9 + $0x50] sm:$0xff]
    %v198 = vld [vmem:[#allocation9 + $0x58] sm:$0xff]
    %v199 = vld [vmem:[#allocation9 + $0x60] sm:$0xff]
    %v200 = vld [vmem:[#allocation9 + $0x68] sm:$0xff]
    %v201 = vld [vmem:[#allocation9 + $0x70] sm:$0xff]
    %v202 = vld [vmem:[#allocation9 + $0x78] sm:$0xff]
    %v203 = vld [vmem:[%s4] sm:$0x1]
    %v204 = vlaneseq
    %v205 = vshrl.u32 %v204, 7
    %v206 = vsub.s32 0, %v205
    %v207 = vrot.slane %v203, %v206
    %208 = vmatprep.subr.mxu0 0.0
    %209 = vmatpush1.msra.mxu0 %v187
    %210 = vmatprep.subr.mxu0 0.0
    %211 = vmatpush1.msra.mxu0 %v188
    %212 = vmatprep.subr.mxu0 0.0
    %213 = vmatpush1.msra.mxu0 %v189
    %214 = vmatprep.subr.mxu0 0.0
    %215 = vmatpush1.msra.mxu0 %v190
    %216 = vmatprep.subr.mxu0 0.0
    %217 = vmatpush1.msra.mxu0 %v191
    %218 = vmatprep.subr.mxu0 0.0
    %219 = vmatpush1.msra.mxu0 %v192
    %220 = vmatprep.subr.mxu0 0.0
    %221 = vmatpush1.msra.mxu0 %v193
    %222 = vmatprep.subr.mxu0 0.0
    %223 = vmatpush1.msra.mxu0 %v194
    %224 = vmatprep.subr.mxu0 0.0
    %225 = vmatpush1.msra.mxu0 %v195
    %226 = vmatprep.subr.mxu0 0.0
    %227 = vmatpush1.msra.mxu0 %v196
    %228 = vmatprep.subr.mxu0 0.0
    %229 = vmatpush1.msra.mxu0 %v197
    %230 = vmatprep.subr.mxu0 0.0
    %231 = vmatpush1.msra.mxu0 %v198
    %232 = vmatprep.subr.mxu0 0.0
    %233 = vmatpush1.msra.mxu0 %v199
    %234 = vmatprep.subr.mxu0 0.0
    %235 = vmatpush1.msra.mxu0 %v200
    %236 = vmatprep.subr.mxu0 0.0
    %237 = vmatpush1.msra.mxu0 %v201
    %238 = vmatprep.subr.mxu0 0.0
    %239 = vmatpush1.msra.mxu0 %v202
    %240 = vmatprep.subr.mxu0 0.0
    %241 = vmatpush1.msra.mxu0 0.0
    %242 = vmatprep.subr.mxu0 0.0
    %243 = vmatpush1.msra.mxu0 0.0
    %244 = vmatprep.subr.mxu0 0.0
    %245 = vmatpush1.msra.mxu0 0.0
    %246 = vmatprep.subr.mxu0 0.0
    %247 = vmatpush1.msra.mxu0 0.0
    %248 = vmatprep.subr.mxu0 0.0
    %249 = vmatpush1.msra.mxu0 0.0
    %250 = vmatprep.subr.mxu0 0.0
    %251 = vmatpush1.msra.mxu0 0.0
    %252 = vmatprep.subr.mxu0 0.0
    %253 = vmatpush1.msra.mxu0 0.0
    %254 = vmatprep.subr.mxu0 0.0
    %255 = vmatpush1.msra.mxu0 0.0
    %256 = vmatprep.subr.mxu0 0.0
    %257 = vmatpush1.msra.mxu0 0.0
    %258 = vmatprep.subr.mxu0 0.0
    %259 = vmatpush1.msra.mxu0 0.0
    %260 = vmatprep.subr.mxu0 0.0
    %261 = vmatpush1.msra.mxu0 0.0
    %262 = vmatprep.subr.mxu0 0.0
    %263 = vmatpush1.msra.mxu0 0.0
    %264 = vmatprep.subr.mxu0 0.0
    %265 = vmatpush1.msra.mxu0 0.0
    %266 = vmatprep.subr.mxu0 0.0
    %267 = vmatpush1.msra.mxu0 0.0
    %268 = vmatprep.subr.mxu0 0.0
    %269 = vmatpush1.msra.mxu0 0.0
    %270 = vmatprep.subr.mxu0 0.0
    %271 = vmatpush1.msra.mxu0 0.0
    %272 = vmatprep.mubr.f32.mxu0 0.0
    %273 = vmatmul.mubr.f32.gmra.mrb[0].mxu0 %v170
    %v274 = vpop.f32.mrb[0].mxu0
    %v275 = vadd.f32 %v207, %v274
    %v276 = vpop.f32.mrb[0].mxu0
    %277 = vmatprep.mubr.f32.mxu0 0.0
    %278 = vmatmul.mubr.f32.gmra.mrb[0].mxu0 %v175
    %v279 = vpop.f32.mrb[0].mxu0
    %v280 = vadd.f32 %v207, %v279
    %v281 = vpop.f32.mrb[0].mxu0
    %282 = vmatprep.mubr.f32.mxu0 0.0
    %283 = vmatmul.mubr.f32.gmra.mrb[0].mxu0 %v180
    %v284 = vpop.f32.mrb[0].mxu0
    %v285 = vadd.f32 %v207, %v284
    %v286 = vpop.f32.mrb[0].mxu0
    %287 = vdwg.mxu0
    %v288 = vmax.f32 %v275, 0.0
    %v289 = vmax.f32 %v280, 0.0
    %v290 = vmax.f32 %v285, 0.0
    %s291 = scalar_lea.vmem [#allocation9], 128
    %v292 = vld [vmem:[%s291] sm:$0xff]
    %v293 = vld [vmem:[%s291 + $0x8] sm:$0xff]
    %v294 = vld [vmem:[%s291 + $0x10] sm:$0xff]
    %v295 = vld [vmem:[%s291 + $0x18] sm:$0xff]
    %v296 = vld [vmem:[%s291 + $0x20] sm:$0xff]
    %v297 = vld [vmem:[%s291 + $0x28] sm:$0xff]
    %v298 = vld [vmem:[%s291 + $0x30] sm:$0xff]
    %v299 = vld [vmem:[%s291 + $0x38] sm:$0xff]
    %v300 = vld [vmem:[%s291 + $0x40] sm:$0xff]
    %v301 = vld [vmem:[%s291 + $0x48] sm:$0xff]
    %v302 = vld [vmem:[%s291 + $0x50] sm:$0xff]
    %v303 = vld [vmem:[%s291 + $0x58] sm:$0xff]
    %v304 = vld [vmem:[%s291 + $0x60] sm:$0xff]
    %v305 = vld [vmem:[%s291 + $0x68] sm:$0xff]
    %v306 = vld [vmem:[%s291 + $0x70] sm:$0xff]
    %v307 = vld [vmem:[%s291 + $0x78] sm:$0xff]
    %v308 = vld [vmem:[%s4 + $0x1] sm:$0x1]
    %v309 = vlaneseq
    %v310 = vshrl.u32 %v309, 7
    %v311 = vsub.s32 0, %v310
    %v312 = vrot.slane %v308, %v311
    %313 = vmatprep.subr.mxu0 0.0
    %314 = vmatpush1.msra.mxu0 %v292
    %315 = vmatprep.subr.mxu0 0.0
    %316 = vmatpush1.msra.mxu0 %v293
    %317 = vmatprep.subr.mxu0 0.0
    %318 = vmatpush1.msra.mxu0 %v294
    %319 = vmatprep.subr.mxu0 0.0
    %320 = vmatpush1.msra.mxu0 %v295
    %321 = vmatprep.subr.mxu0 0.0
    %322 = vmatpush1.msra.mxu0 %v296
    %323 = vmatprep.subr.mxu0 0.0
    %324 = vmatpush1.msra.mxu0 %v297
    %325 = vmatprep.subr.mxu0 0.0
    %326 = vmatpush1.msra.mxu0 %v298
    %327 = vmatprep.subr.mxu0 0.0
    %328 = vmatpush1.msra.mxu0 %v299
    %329 = vmatprep.subr.mxu0 0.0
    %330 = vmatpush1.msra.mxu0 %v300
    %331 = vmatprep.subr.mxu0 0.0
    %332 = vmatpush1.msra.mxu0 %v301
    %333 = vmatprep.subr.mxu0 0.0
    %334 = vmatpush1.msra.mxu0 %v302
    %335 = vmatprep.subr.mxu0 0.0
    %336 = vmatpush1.msra.mxu0 %v303
    %337 = vmatprep.subr.mxu0 0.0
    %338 = vmatpush1.msra.mxu0 %v304
    %339 = vmatprep.subr.mxu0 0.0
    %340 = vmatpush1.msra.mxu0 %v305
    %341 = vmatprep.subr.mxu0 0.0
    %342 = vmatpush1.msra.mxu0 %v306
    %343 = vmatprep.subr.mxu0 0.0
    %344 = vmatpush1.msra.mxu0 %v307
    %345 = vmatprep.subr.mxu0 0.0
    %346 = vmatpush1.msra.mxu0 0.0
    %347 = vmatprep.subr.mxu0 0.0
    %348 = vmatpush1.msra.mxu0 0.0
    %349 = vmatprep.subr.mxu0 0.0
    %350 = vmatpush1.msra.mxu0 0.0
    %351 = vmatprep.subr.mxu0 0.0
    %352 = vmatpush1.msra.mxu0 0.0
    %353 = vmatprep.subr.mxu0 0.0
    %354 = vmatpush1.msra.mxu0 0.0
    %355 = vmatprep.subr.mxu0 0.0
    %356 = vmatpush1.msra.mxu0 0.0
    %357 = vmatprep.subr.mxu0 0.0
    %358 = vmatpush1.msra.mxu0 0.0
    %359 = vmatprep.subr.mxu0 0.0
    %360 = vmatpush1.msra.mxu0 0.0
    %361 = vmatprep.subr.mxu0 0.0
    %362 = vmatpush1.msra.mxu0 0.0
    %363 = vmatprep.subr.mxu0 0.0
    %364 = vmatpush1.msra.mxu0 0.0
    %365 = vmatprep.subr.mxu0 0.0
    %366 = vmatpush1.msra.mxu0 0.0
    %367 = vmatprep.subr.mxu0 0.0
    %368 = vmatpush1.msra.mxu0 0.0
    %369 = vmatprep.subr.mxu0 0.0
    %370 = vmatpush1.msra.mxu0 0.0
    %371 = vmatprep.subr.mxu0 0.0
    %372 = vmatpush1.msra.mxu0 0.0
    %373 = vmatprep.subr.mxu0 0.0
    %374 = vmatpush1.msra.mxu0 0.0
    %375 = vmatprep.subr.mxu0 0.0
    %376 = vmatpush1.msra.mxu0 0.0
    %377 = vmatprep.mubr.f32.mxu0 0.0
    %378 = vmatmul.mubr.f32.gmra.mrb[0].mxu0 %v288
    %v379 = vpop.f32.mrb[0].mxu0
    %v380 = vadd.f32 %v312, %v379
    %v381 = vpop.f32.mrb[0].mxu0
    %382 = vmatprep.mubr.f32.mxu0 0.0
    %383 = vmatmul.mubr.f32.gmra.mrb[0].mxu0 %v289
    %v384 = vpop.f32.mrb[0].mxu0
    %v385 = vadd.f32 %v312, %v384
    %v386 = vpop.f32.mrb[0].mxu0
    %387 = vmatprep.mubr.f32.mxu0 0.0
    %388 = vmatmul.mubr.f32.gmra.mrb[0].mxu0 %v290
    %v389 = vpop.f32.mrb[0].mxu0
    %v390 = vadd.f32 %v312, %v389
    %v391 = vpop.f32.mrb[0].mxu0
    %392 = vdwg.mxu0
    %s393 = scalar_lea.vmem [#allocation9], 256
    %v394 = vld [vmem:[%s393] sm:$0xff]
    %v395 = vld [vmem:[%s393 + $0x8] sm:$0xff]
    %v396 = vld [vmem:[%s393 + $0x10] sm:$0xff]
    %v397 = vld [vmem:[%s393 + $0x18] sm:$0xff]
    %v398 = vld [vmem:[%s393 + $0x20] sm:$0xff]
    %v399 = vld [vmem:[%s393 + $0x28] sm:$0xff]
    %v400 = vld [vmem:[%s393 + $0x30] sm:$0xff]
    %v401 = vld [vmem:[%s393 + $0x38] sm:$0xff]
    %v402 = vld [vmem:[%s393 + $0x40] sm:$0xff]
    %v403 = vld [vmem:[%s393 + $0x48] sm:$0xff]
    %v404 = vld [vmem:[%s393 + $0x50] sm:$0xff]
    %v405 = vld [vmem:[%s393 + $0x58] sm:$0xff]
    %v406 = vld [vmem:[%s393 + $0x60] sm:$0xff]
    %v407 = vld [vmem:[%s393 + $0x68] sm:$0xff]
    %v408 = vld [vmem:[%s393 + $0x70] sm:$0xff]
    %v409 = vld [vmem:[%s393 + $0x78] sm:$0xff]
    %v410 = vld [vmem:[%s4 + $0x2] sm:$0x1]
    %v411 = vlaneseq
    %v412 = vshrl.u32 %v411, 7
    %v413 = vsub.s32 0, %v412
    %v414 = vrot.slane %v410, %v413
    %415 = vmatprep.subr.mxu0 0.0
    %416 = vmatpush1.msra.mxu0 %v394
    %417 = vmatprep.subr.mxu0 0.0
    %418 = vmatpush1.msra.mxu0 %v395
    %419 = vmatprep.subr.mxu0 0.0
    %420 = vmatpush1.msra.mxu0 %v396
    %421 = vmatprep.subr.mxu0 0.0
    %422 = vmatpush1.msra.mxu0 %v397
    %423 = vmatprep.subr.mxu0 0.0
    %424 = vmatpush1.msra.mxu0 %v398
    %425 = vmatprep.subr.mxu0 0.0
    %426 = vmatpush1.msra.mxu0 %v399
    %427 = vmatprep.subr.mxu0 0.0
    %428 = vmatpush1.msra.mxu0 %v400
    %429 = vmatprep.subr.mxu0 0.0
    %430 = vmatpush1.msra.mxu0 %v401
    %431 = vmatprep.subr.mxu0 0.0
    %432 = vmatpush1.msra.mxu0 %v402
    %433 = vmatprep.subr.mxu0 0.0
    %434 = vmatpush1.msra.mxu0 %v403
    %435 = vmatprep.subr.mxu0 0.0
    %436 = vmatpush1.msra.mxu0 %v404
    %437 = vmatprep.subr.mxu0 0.0
    %438 = vmatpush1.msra.mxu0 %v405
    %439 = vmatprep.subr.mxu0 0.0
    %440 = vmatpush1.msra.mxu0 %v406
    %441 = vmatprep.subr.mxu0 0.0
    %442 = vmatpush1.msra.mxu0 %v407
    %443 = vmatprep.subr.mxu0 0.0
    %444 = vmatpush1.msra.mxu0 %v408
    %445 = vmatprep.subr.mxu0 0.0
    %446 = vmatpush1.msra.mxu0 %v409
    %447 = vmatprep.subr.mxu0 0.0
    %448 = vmatpush1.msra.mxu0 0.0
    %449 = vmatprep.subr.mxu0 0.0
    %450 = vmatpush1.msra.mxu0 0.0
    %451 = vmatprep.subr.mxu0 0.0
    %452 = vmatpush1.msra.mxu0 0.0
    %453 = vmatprep.subr.mxu0 0.0
    %454 = vmatpush1.msra.mxu0 0.0
    %455 = vmatprep.subr.mxu0 0.0
    %456 = vmatpush1.msra.mxu0 0.0
    %457 = vmatprep.subr.mxu0 0.0
    %458 = vmatpush1.msra.mxu0 0.0
    %459 = vmatprep.subr.mxu0 0.0
    %460 = vmatpush1.msra.mxu0 0.0
    %461 = vmatprep.subr.mxu0 0.0
    %462 = vmatpush1.msra.mxu0 0.0
    %463 = vmatprep.subr.mxu0 0.0
    %464 = vmatpush1.msra.mxu0 0.0
    %465 = vmatprep.subr.mxu0 0.0
    %466 = vmatpush1.msra.mxu0 0.0
    %467 = vmatprep.subr.mxu0 0.0
    %468 = vmatpush1.msra.mxu0 0.0
    %469 = vmatprep.subr.mxu0 0.0
    %470 = vmatpush1.msra.mxu0 0.0
    %471 = vmatprep.subr.mxu0 0.0
    %472 = vmatpush1.msra.mxu0 0.0
    %473 = vmatprep.subr.mxu0 0.0
    %474 = vmatpush1.msra.mxu0 0.0
    %475 = vmatprep.subr.mxu0 0.0
    %476 = vmatpush1.msra.mxu0 0.0
    %477 = vmatprep.subr.mxu0 0.0
    %478 = vmatpush1.msra.mxu0 0.0
    %479 = vmatprep.mubr.f32.mxu0 0.0
    %480 = vmatmul.mubr.f32.gmra.mrb[0].mxu0 %v183
    %v481 = vpop.f32.mrb[0].mxu0
    %v482 = vadd.f32 %v414, %v481
    %v483 = vpop.f32.mrb[0].mxu0
    %484 = vmatprep.mubr.f32.mxu0 0.0
    %485 = vmatmul.mubr.f32.gmra.mrb[0].mxu0 %v184
    %v486 = vpop.f32.mrb[0].mxu0
    %v487 = vadd.f32 %v414, %v486
    %v488 = vpop.f32.mrb[0].mxu0
    %489 = vmatprep.mubr.f32.mxu0 0.0
    %490 = vmatmul.mubr.f32.gmra.mrb[0].mxu0 %v185
    %v491 = vpop.f32.mrb[0].mxu0
    %v492 = vadd.f32 %v414, %v491
    %v493 = vpop.f32.mrb[0].mxu0
    %494 = vmatprep.mubr.f32.mxu0 0.0
    %495 = vmatmul.mubr.f32.gmra.mrb[0].mxu0 %v186
    %v496 = vpop.f32.mrb[0].mxu0
    %v497 = vadd.f32 %v414, %v496
    %v498 = vpop.f32.mrb[0].mxu0
    %499 = vdwg.mxu0
    %v500 = vmax.f32 %v482, 0.0
    %v501 = vmax.f32 %v487, 0.0
    %v502 = vmax.f32 %v492, 0.0
    %v503 = vmax.f32 %v497, 0.0
    %s504 = scalar_lea.vmem [#allocation9], 384
    %v505 = vld [vmem:[%s504] sm:$0xff]
    %v506 = vld [vmem:[%s504 + $0x8] sm:$0xff]
    %v507 = vld [vmem:[%s504 + $0x10] sm:$0xff]
    %v508 = vld [vmem:[%s504 + $0x18] sm:$0xff]
    %v509 = vld [vmem:[%s504 + $0x20] sm:$0xff]
    %v510 = vld [vmem:[%s504 + $0x28] sm:$0xff]
    %v511 = vld [vmem:[%s504 + $0x30] sm:$0xff]
    %v512 = vld [vmem:[%s504 + $0x38] sm:$0xff]
    %v513 = vld [vmem:[%s504 + $0x40] sm:$0xff]
    %v514 = vld [vmem:[%s504 + $0x48] sm:$0xff]
    %v515 = vld [vmem:[%s504 + $0x50] sm:$0xff]
    %v516 = vld [vmem:[%s504 + $0x58] sm:$0xff]
    %v517 = vld [vmem:[%s504 + $0x60] sm:$0xff]
    %v518 = vld [vmem:[%s504 + $0x68] sm:$0xff]
    %v519 = vld [vmem:[%s504 + $0x70] sm:$0xff]
    %v520 = vld [vmem:[%s504 + $0x78] sm:$0xff]
    %v521 = vld [vmem:[%s4 + $0x3] sm:$0x1]
    %v522 = vlaneseq
    %v523 = vshrl.u32 %v522, 7
    %v524 = vsub.s32 0, %v523
    %v525 = vrot.slane %v521, %v524
    %526 = vmatprep.subr.mxu0 0.0
    %527 = vmatpush1.msra.mxu0 %v505
    %528 = vmatprep.subr.mxu0 0.0
    %529 = vmatpush1.msra.mxu0 %v506
    %530 = vmatprep.subr.mxu0 0.0
    %531 = vmatpush1.msra.mxu0 %v507
    %532 = vmatprep.subr.mxu0 0.0
    %533 = vmatpush1.msra.mxu0 %v508
    %534 = vmatprep.subr.mxu0 0.0
    %535 = vmatpush1.msra.mxu0 %v509
    %536 = vmatprep.subr.mxu0 0.0
    %537 = vmatpush1.msra.mxu0 %v510
    %538 = vmatprep.subr.mxu0 0.0
    %539 = vmatpush1.msra.mxu0 %v511
    %540 = vmatprep.subr.mxu0 0.0
    %541 = vmatpush1.msra.mxu0 %v512
    %542 = vmatprep.subr.mxu0 0.0
    %543 = vmatpush1.msra.mxu0 %v513
    %544 = vmatprep.subr.mxu0 0.0
    %545 = vmatpush1.msra.mxu0 %v514
    %546 = vmatprep.subr.mxu0 0.0
    %547 = vmatpush1.msra.mxu0 %v515
    %548 = vmatprep.subr.mxu0 0.0
    %549 = vmatpush1.msra.mxu0 %v516
    %550 = vmatprep.subr.mxu0 0.0
    %551 = vmatpush1.msra.mxu0 %v517
    %552 = vmatprep.subr.mxu0 0.0
    %553 = vmatpush1.msra.mxu0 %v518
    %554 = vmatprep.subr.mxu0 0.0
    %555 = vmatpush1.msra.mxu0 %v519
    %556 = vmatprep.subr.mxu0 0.0
    %557 = vmatpush1.msra.mxu0 %v520
    %558 = vmatprep.subr.mxu0 0.0
    %559 = vmatpush1.msra.mxu0 0.0
    %560 = vmatprep.subr.mxu0 0.0
    %561 = vmatpush1.msra.mxu0 0.0
    %562 = vmatprep.subr.mxu0 0.0
    %563 = vmatpush1.msra.mxu0 0.0
    %564 = vmatprep.subr.mxu0 0.0
    %565 = vmatpush1.msra.mxu0 0.0
    %566 = vmatprep.subr.mxu0 0.0
    %567 = vmatpush1.msra.mxu0 0.0
    %568 = vmatprep.subr.mxu0 0.0
    %569 = vmatpush1.msra.mxu0 0.0
    %570 = vmatprep.subr.mxu0 0.0
    %571 = vmatpush1.msra.mxu0 0.0
    %572 = vmatprep.subr.mxu0 0.0
    %573 = vmatpush1.msra.mxu0 0.0
    %574 = vmatprep.subr.mxu0 0.0
    %575 = vmatpush1.msra.mxu0 0.0
    %576 = vmatprep.subr.mxu0 0.0
    %577 = vmatpush1.msra.mxu0 0.0
    %578 = vmatprep.subr.mxu0 0.0
    %579 = vmatpush1.msra.mxu0 0.0
    %580 = vmatprep.subr.mxu0 0.0
    %581 = vmatpush1.msra.mxu0 0.0
    %582 = vmatprep.subr.mxu0 0.0
    %583 = vmatpush1.msra.mxu0 0.0
    %584 = vmatprep.subr.mxu0 0.0
    %585 = vmatpush1.msra.mxu0 0.0
    %586 = vmatprep.subr.mxu0 0.0
    %587 = vmatpush1.msra.mxu0 0.0
    %588 = vmatprep.subr.mxu0 0.0
    %589 = vmatpush1.msra.mxu0 0.0
    %590 = vmatprep.mubr.f32.mxu0 0.0
    %591 = vmatmul.mubr.f32.gmra.mrb[0].mxu0 %v500
    %v592 = vpop.f32.mrb[0].mxu0
    %v593 = vadd.f32 %v525, %v592
    %v594 = vpop.f32.mrb[0].mxu0
    %595 = vmatprep.mubr.f32.mxu0 0.0
    %596 = vmatmul.mubr.f32.gmra.mrb[0].mxu0 %v501
    %v597 = vpop.f32.mrb[0].mxu0
    %v598 = vadd.f32 %v525, %v597
    %v599 = vpop.f32.mrb[0].mxu0
    %600 = vmatprep.mubr.f32.mxu0 0.0
    %601 = vmatmul.mubr.f32.gmra.mrb[0].mxu0 %v502
    %v602 = vpop.f32.mrb[0].mxu0
    %v603 = vadd.f32 %v525, %v602
    %v604 = vpop.f32.mrb[0].mxu0
    %605 = vmatprep.mubr.f32.mxu0 0.0
    %606 = vmatmul.mubr.f32.gmra.mrb[0].mxu0 %v503
    %v607 = vpop.f32.mrb[0].mxu0
    %v608 = vadd.f32 %v525, %v607
    %v609 = vpop.f32.mrb[0].mxu0
    %610 = vdwg.mxu0
    %v611 = vmul.f32 %v380, %v380
    %v612 = vmul.f32 %v385, %v385
    %v613 = vmul.f32 %v390, %v390
    %614 = vadd.xlane.f32.xlu0 %v611
    %v615 = vpop.xlane.xlu0 %614
    %616 = vadd.xlane.f32.xlu0 %v612
    %v617 = vpop.xlane.xlu0 %616
    %vm618 = vcmask 1043456
    %v619 = vsel %vm618, %v613, 0.0
    %620 = vadd.xlane.f32.xlu0 %v619
    %v621 = vpop.xlane.xlu0 %620
    %v622 = vmax.f32 %v615, 1e-24
    %v623 = vmax.f32 %v617, 1e-24
    %v624 = vmax.f32 %v621, 1e-24
    %v625 = vrsqrt.pop %v622
    %v626 = vrsqrt.pop %v623
    %v627 = vrsqrt.pop %v624
    %v628 = vmul.f32 %v380, %v625
    %v629 = vmul.f32 %v385, %v626
    %v630 = vmul.f32 %v390, %v627
    %v631 = vmul.f32 %v593, %v593
    %v632 = vmul.f32 %v598, %v598
    %v633 = vmul.f32 %v603, %v603
    %v634 = vmul.f32 %v608, %v608
    %635 = vadd.xlane.f32.xlu0 %v631
    %v636 = vpop.xlane.xlu0 %635
    %637 = vadd.xlane.f32.xlu0 %v632
    %v638 = vpop.xlane.xlu0 %637
    %639 = vadd.xlane.f32.xlu0 %v633
    %v640 = vpop.xlane.xlu0 %639
    %641 = vadd.xlane.f32.xlu0 %v634
    %v642 = vpop.xlane.xlu0 %641
    %v643 = vmax.f32 %v636, 1e-24
    %v644 = vmax.f32 %v638, 1e-24
    %v645 = vmax.f32 %v640, 1e-24
    %v646 = vmax.f32 %v642, 1e-24
    %v647 = vrsqrt.pop %v643
    %v648 = vrsqrt.pop %v644
    %v649 = vrsqrt.pop %v645
    %v650 = vrsqrt.pop %v646
    %v651 = vmul.f32 %v593, %v647
    %v652 = vmul.f32 %v598, %v648
    %v653 = vmul.f32 %v603, %v649
    %v654 = vmul.f32 %v608, %v650
    %v655 = vlaneseq
    %v656 = vshrl.u32 %v655, 7
    %v657 = vadd.s32 %v656, 8
    %v658 = vadd.s32 %v656, 16
    %vm659 = vcmp.ge.s32.totalorder %v656, 5
    %vm660 = vcmp.ge.s32.totalorder %v657, 5
    %vm661 = vcmp.ge.s32.totalorder %v658, 5
    %v662 = vsel %vm659, 1, 0
    %v663 = vsel %vm660, 1, 0
    %v664 = vsel %vm661, 1, 0
    %vm665 = vcmp.ge.s32.totalorder %v656, 10
    %vm666 = vcmp.ge.s32.totalorder %v657, 10
    %vm667 = vcmp.ge.s32.totalorder %v658, 10
    %v668 = vsel %vm665, 1, 0
    %v669 = vsel %vm666, 1, 0
    %v670 = vsel %vm667, 1, 0
    %v671 = vadd.s32 %v662, %v668
    %v672 = vadd.s32 %v663, %v669
    %v673 = vadd.s32 %v664, %v670
    %vm674 = vcmp.ge.s32.totalorder %v656, 15
    %vm675 = vcmp.ge.s32.totalorder %v657, 15
    %vm676 = vcmp.ge.s32.totalorder %v658, 15
    %v677 = vsel %vm674, 1, 0
    %v678 = vsel %vm675, 1, 0
    %v679 = vsel %vm676, 1, 0
    %v680 = vadd.s32 %v671, %v677
    %v681 = vadd.s32 %v672, %v678
    %v682 = vadd.s32 %v673, %v679
    %v683 = vlaneseq
    %v684 = vand.u32 %v683, 127
    %vm685 = vcmp.ge.s32.totalorder %v684, 8
    %v686 = vsel %vm685, 1, 0
    %vm687 = vcmp.ge.s32.totalorder %v684, 16
    %v688 = vsel %vm687, 1, 0
    %v689 = vadd.s32 %v686, %v688
    %vm690 = vcmp.ge.s32.totalorder %v684, 24
    %v691 = vsel %vm690, 1, 0
    %v692 = vadd.s32 %v689, %v691
    %vm693 = vcmp.eq.s32.totalorder %v680, %v692
    %vm694 = vcmp.eq.s32.totalorder %v681, %v692
    %vm695 = vcmp.eq.s32.totalorder %v682, %v692
    %v696 = vsel %vm693, 1, 0
    %v697 = vsel %vm694, 1, 0
    %v698 = vsel %vm695, 1, 0
    %v699 = vcvt.s32.f32 %v696
    %v700 = vcvt.s32.f32 %v697
    %v701 = vcvt.s32.f32 %v698
    %vm702 = vcmp.ge.s32.totalorder %v684, 5
    %v703 = vsel %vm702, 1, 0
    %vm704 = vcmp.ge.s32.totalorder %v684, 10
    %v705 = vsel %vm704, 1, 0
    %v706 = vadd.s32 %v703, %v705
    %vm707 = vcmp.ge.s32.totalorder %v684, 15
    %v708 = vsel %vm707, 1, 0
    %v709 = vadd.s32 %v706, %v708
    %vm710 = vcmp.eq.s32.totalorder %v680, %v709
    %vm711 = vcmp.eq.s32.totalorder %v681, %v709
    %vm712 = vcmp.eq.s32.totalorder %v682, %v709
    %v713 = vsel %vm710, 1, 0
    %v714 = vsel %vm711, 1, 0
    %v715 = vsel %vm712, 1, 0
    %v716 = vcvt.s32.f32 %v713
    %v717 = vcvt.s32.f32 %v714
    %v718 = vcvt.s32.f32 %v715
    %vm719 = vcmp.eq.s32.totalorder %v656, %v709
    %v720 = vsel %vm719, 1, 0
    %v721 = vcvt.s32.f32 %v720
    %v722 = vmul.f32 %v721, 0.2
    %723 = vmatprep.subr.mxu0 0.0
    %724 = vmatpush1.xpose.msra.mxu0 %v651
    %725 = vmatprep.subr.mxu0 0.0
    %726 = vmatpush1.xpose.msra.mxu0 %v652
    %727 = vmatprep.subr.mxu0 0.0
    %728 = vmatpush1.xpose.msra.mxu0 %v653
    %729 = vmatprep.subr.mxu0 0.0
    %730 = vmatpush1.xpose.msra.mxu0 %v654
    %731 = vmatprep.subr.mxu0 0.0
    %732 = vmatpush1.xpose.msra.mxu0 0.0
    %733 = vmatprep.subr.mxu0 0.0
    %734 = vmatpush1.xpose.msra.mxu0 0.0
    %735 = vmatprep.subr.mxu0 0.0
    %736 = vmatpush1.xpose.msra.mxu0 0.0
    %737 = vmatprep.subr.mxu0 0.0
    %738 = vmatpush1.xpose.msra.mxu0 0.0
    %739 = vmatprep.subr.mxu0 0.0
    %740 = vmatpush1.xpose.msra.mxu0 0.0
    %741 = vmatprep.subr.mxu0 0.0
    %742 = vmatpush1.xpose.msra.mxu0 0.0
    %743 = vmatprep.subr.mxu0 0.0
    %744 = vmatpush1.xpose.msra.mxu0 0.0
    %745 = vmatprep.subr.mxu0 0.0
    %746 = vmatpush1.xpose.msra.mxu0 0.0
    %747 = vmatprep.subr.mxu0 0.0
    %748 = vmatpush1.xpose.msra.mxu0 0.0
    %749 = vmatprep.subr.mxu0 0.0
    %750 = vmatpush1.xpose.msra.mxu0 0.0
    %751 = vmatprep.subr.mxu0 0.0
    %752 = vmatpush1.xpose.msra.mxu0 0.0
    %753 = vmatprep.subr.mxu0 0.0
    %754 = vmatpush1.xpose.msra.mxu0 0.0
    %755 = vmatprep.subr.mxu0 0.0
    %756 = vmatpush1.xpose.msra.mxu0 0.0
    %757 = vmatprep.subr.mxu0 0.0
    %758 = vmatpush1.xpose.msra.mxu0 0.0
    %759 = vmatprep.subr.mxu0 0.0
    %760 = vmatpush1.xpose.msra.mxu0 0.0
    %761 = vmatprep.subr.mxu0 0.0
    %762 = vmatpush1.xpose.msra.mxu0 0.0
    %763 = vmatprep.subr.mxu0 0.0
    %764 = vmatpush1.xpose.msra.mxu0 0.0
    %765 = vmatprep.subr.mxu0 0.0
    %766 = vmatpush1.xpose.msra.mxu0 0.0
    %767 = vmatprep.subr.mxu0 0.0
    %768 = vmatpush1.xpose.msra.mxu0 0.0
    %769 = vmatprep.subr.mxu0 0.0
    %770 = vmatpush1.xpose.msra.mxu0 0.0
    %771 = vmatprep.subr.mxu0 0.0
    %772 = vmatpush1.xpose.msra.mxu0 0.0
    %773 = vmatprep.subr.mxu0 0.0
    %774 = vmatpush1.xpose.msra.mxu0 0.0
    %775 = vmatprep.subr.mxu0 0.0
    %776 = vmatpush1.xpose.msra.mxu0 0.0
    %777 = vmatprep.subr.mxu0 0.0
    %778 = vmatpush1.xpose.msra.mxu0 0.0
    %779 = vmatprep.subr.mxu0 0.0
    %780 = vmatpush1.xpose.msra.mxu0 0.0
    %781 = vmatprep.subr.mxu0 0.0
    %782 = vmatpush1.xpose.msra.mxu0 0.0
    %783 = vmatprep.subr.mxu0 0.0
    %784 = vmatpush1.xpose.msra.mxu0 0.0
    %785 = vmatprep.subr.mxu0 0.0
    %786 = vmatpush1.xpose.msra.mxu0 0.0
    %787 = vmatprep.mubr.f32.mxu0 0.0
    %788 = vmatmul.mubr.f32.gmra.mrb[0].mxu0 %v628
    %v789 = vpop.f32.mrb[0].mxu0
    %v790 = vadd.f32 0.0, %v789
    %v791 = vpop.f32.mrb[0].mxu0
    %792 = vmatprep.mubr.f32.mxu0 0.0
    %793 = vmatmul.mubr.f32.gmra.mrb[0].mxu0 %v629
    %v794 = vpop.f32.mrb[0].mxu0
    %v795 = vadd.f32 0.0, %v794
    %v796 = vpop.f32.mrb[0].mxu0
    %797 = vmatprep.mubr.f32.mxu0 0.0
    %798 = vmatmul.mubr.f32.gmra.mrb[0].mxu0 %v630
    %v799 = vpop.f32.mrb[0].mxu0
    %v800 = vadd.f32 0.0, %v799
    %v801 = vpop.f32.mrb[0].mxu0
    %802 = vdwg.mxu0
    %v803 = vsel %vm693, %v790, -1e+30
    %v804 = vsel %vm694, %v795, -1e+30
    %v805 = vsel %vm695, %v800, -1e+30
    %vm806 = vcmask 261120
    %v807 = vsel %vm806, %v803, -inf
    %808 = vmax.xlane.f32.xlu0 %v807
    %v809 = vpop.xlane.xlu0 %808
    %v810 = vsel %vm806, %v804, -inf
    %811 = vmax.xlane.f32.xlu0 %v810
    %v812 = vpop.xlane.xlu0 %811
    %vm813 = vcmask 257024
    %v814 = vsel %vm813, %v805, -inf
    %815 = vmax.xlane.f32.xlu0 %v814
    %v816 = vpop.xlane.xlu0 %815
    %v817 = vsub.f32 %v790, %v809
    %v818 = vsub.f32 %v795, %v812
    %v819 = vsub.f32 %v800, %v816
    %v820 = vmul.f32 %v817, 1.442695
    %v821 = vpow.pop %v820
    %v822 = vmul.f32 %v818, 1.442695
    %v823 = vpow.pop %v822
    %v824 = vmul.f32 %v819, 1.442695
    %v825 = vpow.pop %v824
    %v826 = vmul.f32 %v821, %v699
    %v827 = vmul.f32 %v823, %v700
    %v828 = vmul.f32 %v825, %v701
    %v829 = vsel %vm806, %v826, 0.0
    %830 = vadd.xlane.f32.xlu0 %v829
    %v831 = vpop.xlane.xlu0 %830
    %v832 = vsel %vm806, %v827, 0.0
    %833 = vadd.xlane.f32.xlu0 %v832
    %v834 = vpop.xlane.xlu0 %833
    %v835 = vsel %vm813, %v828, 0.0
    %836 = vadd.xlane.f32.xlu0 %v835
    %v837 = vpop.xlane.xlu0 %836
    %v838 = vrcp.pop %v831
    %v839 = vmul.f32 %v826, %v838
    %v840 = vrcp.pop %v834
    %v841 = vmul.f32 %v827, %v840
    %v842 = vrcp.pop %v837
    %v843 = vmul.f32 %v828, %v842
    %v845 = vsel %vm806, %v839, 0
    %v848 = vsel %vm806, %v841, 0
    %v851 = vsel %vm806, %v843, 0
    %v854 = vsel %vm806, %v790, 0
    %v857 = vsel %vm806, %v795, 0
    %v860 = vsel %vm806, %v800, 0
    %862 = vmatprep.subr.mxu0 0.0
    %863 = vmatpush1.xpose.msra.mxu0 %v854
    %864 = vmatprep.subr.mxu0 0.0
    %865 = vmatpush1.xpose.msra.mxu0 %v857
    %866 = vmatprep.subr.mxu0 0.0
    %867 = vmatpush1.xpose.msra.mxu0 %v860
    %868 = vmatprep.subr.mxu0 0.0
    %869 = vmatpush1.xpose.msra.mxu0 0.0
    %870 = vmatprep.subr.mxu0 0.0
    %871 = vmatpush1.xpose.msra.mxu0 0.0
    %872 = vmatprep.subr.mxu0 0.0
    %873 = vmatpush1.xpose.msra.mxu0 0.0
    %874 = vmatprep.subr.mxu0 0.0
    %875 = vmatpush1.xpose.msra.mxu0 0.0
    %876 = vmatprep.subr.mxu0 0.0
    %877 = vmatpush1.xpose.msra.mxu0 0.0
    %878 = vmatprep.subr.mxu0 0.0
    %879 = vmatpush1.xpose.msra.mxu0 0.0
    %880 = vmatprep.subr.mxu0 0.0
    %881 = vmatpush1.xpose.msra.mxu0 0.0
    %882 = vmatprep.subr.mxu0 0.0
    %883 = vmatpush1.xpose.msra.mxu0 0.0
    %884 = vmatprep.subr.mxu0 0.0
    %885 = vmatpush1.xpose.msra.mxu0 0.0
    %886 = vmatprep.subr.mxu0 0.0
    %887 = vmatpush1.xpose.msra.mxu0 0.0
    %888 = vmatprep.subr.mxu0 0.0
    %889 = vmatpush1.xpose.msra.mxu0 0.0
    %890 = vmatprep.subr.mxu0 0.0
    %891 = vmatpush1.xpose.msra.mxu0 0.0
    %892 = vmatprep.subr.mxu0 0.0
    %893 = vmatpush1.xpose.msra.mxu0 0.0
    %894 = vmatprep.subr.mxu0 0.0
    %895 = vmatpush1.xpose.msra.mxu0 0.0
    %896 = vmatprep.subr.mxu0 0.0
    %897 = vmatpush1.xpose.msra.mxu0 0.0
    %898 = vmatprep.subr.mxu0 0.0
    %899 = vmatpush1.xpose.msra.mxu0 0.0
    %900 = vmatprep.subr.mxu0 0.0
    %901 = vmatpush1.xpose.msra.mxu0 0.0
    %902 = vmatprep.subr.mxu0 0.0
    %903 = vmatpush1.xpose.msra.mxu0 0.0
    %904 = vmatprep.subr.mxu0 0.0
    %905 = vmatpush1.xpose.msra.mxu0 0.0
    %906 = vmatprep.subr.mxu0 0.0
    %907 = vmatpush1.xpose.msra.mxu0 0.0
    %908 = vmatprep.subr.mxu0 0.0
    %909 = vmatpush1.xpose.msra.mxu0 0.0
    %910 = vmatprep.subr.mxu0 0.0
    %911 = vmatpush1.xpose.msra.mxu0 0.0
    %912 = vmatprep.subr.mxu0 0.0
    %913 = vmatpush1.xpose.msra.mxu0 0.0
    %914 = vmatprep.subr.mxu0 0.0
    %915 = vmatpush1.xpose.msra.mxu0 0.0
    %916 = vmatprep.subr.mxu0 0.0
    %917 = vmatpush1.xpose.msra.mxu0 0.0
    %918 = vmatprep.subr.mxu0 0.0
    %919 = vmatpush1.xpose.msra.mxu0 0.0
    %920 = vmatprep.subr.mxu0 0.0
    %921 = vmatpush1.xpose.msra.mxu0 0.0
    %922 = vmatprep.subr.mxu0 0.0
    %923 = vmatpush1.xpose.msra.mxu0 0.0
    %924 = vmatprep.subr.mxu0 0.0
    %925 = vmatpush1.xpose.msra.mxu0 0.0
    %926 = vmatprep.mubr.f32.mxu0 0.0
    %927 = vmatmul.mubr.f32.gmra.mrb[0].mxu0 %v845
    %v928 = vpop.f32.mrb[0].mxu0
    %v929 = vadd.f32 0.0, %v928
    %v930 = vpop.f32.mrb[0].mxu0
    %931 = vmatprep.mubr.f32.mxu0 0.0
    %932 = vmatmul.mubr.f32.gmra.mrb[0].mxu0 %v848
    %v933 = vpop.f32.mrb[0].mxu0
    %v934 = vadd.f32 0.0, %v933
    %v935 = vpop.f32.mrb[0].mxu0
    %936 = vmatprep.mubr.f32.mxu0 0.0
    %937 = vmatmul.mubr.f32.gmra.mrb[0].mxu0 %v851
    %v938 = vpop.f32.mrb[0].mxu0
    %v939 = vadd.f32 0.0, %v938
    %v940 = vpop.f32.mrb[0].mxu0
    %941 = vdwg.mxu0
    %v942 = vmul.f32 %v929, %v716
    %v943 = vmul.f32 %v934, %v717
    %v944 = vmul.f32 %v939, %v718
    %vm945 = vcmask 162816
    %v946 = vsel %vm945, %v942, 0.0
    %947 = vadd.xlane.f32.xlu0 %v946
    %v948 = vpop.xlane.xlu0 %947
    %v949 = vsel %vm945, %v943, 0.0
    %950 = vadd.xlane.f32.xlu0 %v949
    %v951 = vpop.xlane.xlu0 %950
    %vm952 = vcmask 158720
    %v953 = vsel %vm952, %v944, 0.0
    %954 = vadd.xlane.f32.xlu0 %v953
    %v955 = vpop.xlane.xlu0 %954
    %v957 = vsel %vm945, %v722, 0
    %v960 = vsel %vm618, %v955, 0
    %962 = vmatprep.subr.mxu0 0.0
    %963 = vmatpush1.msra.mxu0 %v948
    %964 = vmatprep.subr.mxu0 0.0
    %965 = vmatpush1.msra.mxu0 %v951
    %966 = vmatprep.subr.mxu0 0.0
    %967 = vmatpush1.msra.mxu0 %v960
    %968 = vmatprep.subr.mxu0 0.0
    %969 = vmatpush1.msra.mxu0 0.0
    %970 = vmatprep.subr.mxu0 0.0
    %971 = vmatpush1.msra.mxu0 0.0
    %972 = vmatprep.subr.mxu0 0.0
    %973 = vmatpush1.msra.mxu0 0.0
    %974 = vmatprep.subr.mxu0 0.0
    %975 = vmatpush1.msra.mxu0 0.0
    %976 = vmatprep.subr.mxu0 0.0
    %977 = vmatpush1.msra.mxu0 0.0
    %978 = vmatprep.subr.mxu0 0.0
    %979 = vmatpush1.msra.mxu0 0.0
    %980 = vmatprep.subr.mxu0 0.0
    %981 = vmatpush1.msra.mxu0 0.0
    %982 = vmatprep.subr.mxu0 0.0
    %983 = vmatpush1.msra.mxu0 0.0
    %984 = vmatprep.subr.mxu0 0.0
    %985 = vmatpush1.msra.mxu0 0.0
    %986 = vmatprep.subr.mxu0 0.0
    %987 = vmatpush1.msra.mxu0 0.0
    %988 = vmatprep.subr.mxu0 0.0
    %989 = vmatpush1.msra.mxu0 0.0
    %990 = vmatprep.subr.mxu0 0.0
    %991 = vmatpush1.msra.mxu0 0.0
    %992 = vmatprep.subr.mxu0 0.0
    %993 = vmatpush1.msra.mxu0 0.0
    %994 = vmatprep.subr.mxu0 0.0
    %995 = vmatpush1.msra.mxu0 0.0
    %996 = vmatprep.subr.mxu0 0.0
    %997 = vmatpush1.msra.mxu0 0.0
    %998 = vmatprep.subr.mxu0 0.0
    %999 = vmatpush1.msra.mxu0 0.0
    %1000 = vmatprep.subr.mxu0 0.0
    %1001 = vmatpush1.msra.mxu0 0.0
    %1002 = vmatprep.subr.mxu0 0.0
    %1003 = vmatpush1.msra.mxu0 0.0
    %1004 = vmatprep.subr.mxu0 0.0
    %1005 = vmatpush1.msra.mxu0 0.0
    %1006 = vmatprep.subr.mxu0 0.0
    %1007 = vmatpush1.msra.mxu0 0.0
    %1008 = vmatprep.subr.mxu0 0.0
    %1009 = vmatpush1.msra.mxu0 0.0
    %1010 = vmatprep.subr.mxu0 0.0
    %1011 = vmatpush1.msra.mxu0 0.0
    %1012 = vmatprep.subr.mxu0 0.0
    %1013 = vmatpush1.msra.mxu0 0.0
    %1014 = vmatprep.subr.mxu0 0.0
    %1015 = vmatpush1.msra.mxu0 0.0
    %1016 = vmatprep.subr.mxu0 0.0
    %1017 = vmatpush1.msra.mxu0 0.0
    %1018 = vmatprep.subr.mxu0 0.0
    %1019 = vmatpush1.msra.mxu0 0.0
    %1020 = vmatprep.subr.mxu0 0.0
    %1021 = vmatpush1.msra.mxu0 0.0
    %1022 = vmatprep.subr.mxu0 0.0
    %1023 = vmatpush1.msra.mxu0 0.0
    %1024 = vmatprep.subr.mxu0 0.0
    %1025 = vmatpush1.msra.mxu0 0.0
    %1026 = vmatprep.mubr.f32.mxu0 0.0
    %1027 = vmatmul.mubr.f32.gmra.mrb[0].mxu0 %v957
    %v1028 = vpop.f32.mrb[0].mxu0
    %v1029 = vadd.f32 0.0, %v1028
    %v1030 = vpop.f32.mrb[0].mxu0
    %1031 = vdwg.mxu0
    %s1032 = sld [smem:[#allocation2]]
    %v1033 = vstv %s1032
    %v1034 = vrcp.pop %v1033
    %v1035 = vmul.f32 %v1029, %v1034
    %v1036 = vmul.f32 %v1035, 1.442695
    %v1037 = vpow.pop %v1036
    %vm1038 = vcmask 3072
    %v1039 = vsel %vm1038, %v1037, 0.0
    %v1040 = vrot.slane %v1039, 4
    %v1041 = vadd.f32 %v1039, %v1040
    %v1042 = vrot.slane %v1041, 2
    %v1043 = vadd.f32 %v1041, %v1042
    %v1044 = vrot.slane %v1043, 1
    %v1045 = vadd.f32 %v1043, %v1044
    %v1046 = vlaneseq
    %v1047 = vshrl.u32 %v1046, 7
    %v1048 = vsub.s32 0, %v1047
    %v1049 = vrot.slane %v1037, %v1048
    %v1050 = vrcp.pop %v1037
    %v1051 = vmul.f32 %v1049, %v1050
    %v1052 = vlog2.pop %v1051
    %v1053 = vmul.f32 %v1052, 0.6931472
    %v1054 = vsub.f32 0.0, %v1053
    %v1055 = vrcp.pop %v1045
    %v1056 = vmul.f32 %v1037, %v1055
    %v1057 = vlog2.pop %v1056
    %v1058 = vmul.f32 %v1057, 0.6931472
    %v1059 = vsub.f32 0.0, %v1058
    %v1060 = vsel %vm1038, %v1054, 0.0
    %1061 = vadd.xlane.f32.xlu0 %v1060
    %v1062 = vpop.xlane.xlu0 %1061
    %v1063 = vrot.slane %v1062, 4
    %v1064 = vadd.f32 %v1062, %v1063
    %v1065 = vrot.slane %v1064, 2
    %v1066 = vadd.f32 %v1064, %v1065
    %v1067 = vrot.slane %v1066, 1
    %v1068 = vadd.f32 %v1066, %v1067
    %s1069 = vtos %v1068
    %v1070 = vstv %s1069
    %v1071 = vrcp.pop 4.0
    %v1072 = vmul.f32 %v1070, %v1071
    %v1073 = vadd.f32 %v1059, 0.0
    %s1074 = vtos %v1073
    %v1075 = vstv %s1074
    %v1076 = vadd.f32 %v1072, %v1075
    %v1077 = vmul.f32 %v1076, 0.5
    %vm1078 = vcmask 0
    %1079 = vst.msk [vmem:[#allocation11] sm:$0x1] %vm1078, %v1077
    // Predicated region
    $region42: #{tpu_custom_call.1} parent=1 // pred_check
      _
    $region43: #{tpu_custom_call.1} parent=1 // pred_check_branch
      %1081 = sbr.rel (0) target = $region45
    $region44: #{tpu_custom_call.1} parent=1 // pred_region
      %s1083 = ssub.s32 16, 16
      %1084 = vsyncadd [#allocation5], %s1083
      %s1086 = sshll.u32 [#allocation11], 4
      %s1087 = int_to_ptr.vmem [resolvable:$true] %s1086
      %1089 = dma.vmem_to_hbm [thread:$0]  %s1087, 16, %s6, [#allocation5]
    $region45: #{tpu_custom_call.1} parent=1 // pred_fallthru
      _
    // Predicated region
    $region46: #{tpu_custom_call.1} parent=1 // pred_check
      _
    $region47: #{tpu_custom_call.1} parent=1 // pred_check_branch
      %1091 = sbr.rel (0) target = $region49
    $region48: #{tpu_custom_call.1} parent=1 // pred_region
      %1092 = dma.done [#allocation5], 16
    $region49: #{tpu_custom_call.1} parent=1 // pred_fallthru
      _
    %1093 = vsyncpa [#allocation4], 1
    %1094 = vsyncpa [#allocation7], 1
    %1095 = vsyncpa [#allocation10], 1
    %1096 = vsyncpa [#allocation5], 1

</llo_original>
